<compile_context>
chip_gen: v7x
topology: tpu7x:2x2x1
jax: 0.10.0
libtpu: 0.0.40
codegen_flags: <defaults>
</compile_context>

<pallas_src>
import jax
import jax.numpy as jnp
from jax.experimental import pallas as pl
from jax.experimental.pallas import tpu as pltpu


def dummy_layer_kernel(dummy_ref, x_ref, o_ref):
    # dummy_ref is a (1,) scalar parameter in SMEM; cast to the activation
    # dtype so arithmetic is not silently promoted (e.g. bf16 activations).
    d = dummy_ref[0].astype(x_ref.dtype)
    # Reproduce `x + dummy - dummy` exactly (keep the add/sub pair).
    o_ref[...] = (x_ref[...] + d) - d


def dummy_layer(x: jax.Array, dummy: jax.Array) -> jax.Array:
    """Pallas equivalent of DummyLayer.forward: returns x + dummy - dummy."""
    orig_shape = x.shape
    orig_dtype = x.dtype

    lane = 128
    total = x.size
    # Flatten to a lane-dense (rows, 128) slab; pad if needed so the last dim
    # maps cleanly onto the 128-lane axis (unmasked vld/vst path).
    pad = (-total) % lane
    flat = x.reshape(-1)
    if pad:
        flat = jnp.concatenate([flat, jnp.zeros((pad,), dtype=orig_dtype)])
    rows = (total + pad) // lane
    x2d = flat.reshape(rows, lane)

    n_elems = rows * lane
    out2d = pl.pallas_call(
        dummy_layer_kernel,
        out_shape=jax.ShapeDtypeStruct((rows, lane), orig_dtype),
        # Gridless single-block call: whole slab lives in VMEM, scalar in SMEM.
        in_specs=[
            pl.BlockSpec(memory_space=pltpu.SMEM),   # dummy scalar (1,)
            pl.BlockSpec(memory_space=pltpu.VMEM),   # full (rows, 128) slab
        ],
        out_specs=pl.BlockSpec(memory_space=pltpu.VMEM),
        # Donate x2d's buffer to the output (input index 1 -> output index 0).
        input_output_aliases={1: 0},
        cost_estimate=pl.CostEstimate(
            flops=2 * n_elems,
            transcendentals=0,
            bytes_accessed=2 * x2d.dtype.itemsize * n_elems,
        ),
    )(dummy, x2d)

    out_flat = out2d.reshape(-1)
    if pad:
        out_flat = out_flat[:total]
    return out_flat.reshape(orig_shape)

    # TODO(synk): for realistically large activations, tile rows (e.g. (1024,128)
    # blocks) with a 'parallel' grid axis instead of one monolithic block.


if __name__ == "__main__":
    key = jax.random.PRNGKey(0)
    # NCHW input, as in PyTorch conv convention: batch=2, channels=4, 16x16 spatial.
    x = jax.random.normal(key, (2, 4, 16, 16), dtype=jnp.float32)

    # Deterministic parameter init matching nn.Parameter(torch.ones(1)).
    dummy = jnp.ones((1,), dtype=jnp.float32)

    out = dummy_layer(x, dummy)
    out = jax.block_until_ready(out)

    # Sanity check against the trivial reference.
    ref = x + dummy - dummy
    assert out.shape == x.shape and out.dtype == x.dtype
    assert jnp.allclose(out, ref), "mismatch vs reference"

    print("KERNEL_OK")
</pallas_src>

<mosaic_0001>
module attributes {stable_mosaic.version = 11 : i64} {
  func.func @dummy_layer_kernel(%arg0: memref<1xf32, #tpu.memory_space<smem>>, %arg1: memref<16x128xf32, #tpu.memory_space<vmem>>, %arg2: memref<16x128xf32, #tpu.memory_space<vmem>>) attributes {dimension_semantics = [], scalar_prefetch = 0 : i64, scratch_operands = 0 : i64, tpu.core_type = #tpu.core_type<tc>} {
    %c0 = arith.constant 0 : index
    %0 = memref.load %arg0[%c0] : memref<1xf32, #tpu.memory_space<smem>>
    %c0_0 = arith.constant 0 : index
    %c0_1 = arith.constant 0 : index
    %1 = vector.load %arg1[%c0_0, %c0_1] : memref<16x128xf32, #tpu.memory_space<vmem>>, vector<16x128xf32>
    %2 = vector.broadcast %0 : f32 to vector<16x128xf32>
    %3 = arith.addf %1, %2 : vector<16x128xf32>
    %4 = vector.broadcast %0 : f32 to vector<16x128xf32>
    %5 = arith.subf %3, %4 : vector<16x128xf32>
    %c0_2 = arith.constant 0 : index
    %c0_3 = arith.constant 0 : index
    %6 = vector.load %arg2[%c0_2, %c0_3] : memref<16x128xf32, #tpu.memory_space<vmem>>, vector<16x128xf32>
    tpu.vector_store %arg2[%c0_2, %c0_3], %5 {strides = array<i32>} : memref<16x128xf32, #tpu.memory_space<vmem>>, vector<16x128xf32>,
    return
  }
}

</mosaic_0001>

<llo_original>
// kernel: tpu_custom_call.1
$region0: #{tpu_custom_call.1}
  #allocation0 [shape = 'u32[]', space=smem, size = 0x4, offset = 0x4, fixed_abs, tag = 'smem constant byte address 0x4 - core index']
  #allocation1 [shape = 'u32[144,128]{1,0:T(1,128)}', space=vmem, size = 0x12000, scoped, tag = 'internal scratch']
  #allocation2 [shape = 'f32[1]{0:T(128)S(6)}', space=smem, size = 0x200, scoped, tag = 'scoped memory for tpu_custom_call.1']
  %s0 = inlined_call_operand.<no memory space> [shape: f32[1], index: 0, kind: input, shape index: {}]
  %s1 = inlined_call_operand.hbm [shape: f32[16,128], index: 1, kind: input, shape index: {}, may-alias: {1,2}]
  %s2 = inlined_call_operand.hbm [shape: f32[16,128], index: 2, kind: output, shape index: {}, may-alias: {1,2}]
  %s3 = sld [smem:[#allocation0]]
  $region22: #{tpu_custom_call.1} parent=0
    _
  %s5 = ssub.s32 1, %s3
  %s6 = scalar_select 0, %s5, %s3
  %7 = sst [smem:[#allocation2]] %s0
  $region1: #{tpu_custom_call.1} parent=0
    #allocation3 [shape = 'u8[8192]{0}', space=vmem, size = 0x2000, scoped, tag = 'input window, operand 1, single buffered']
    #allocation4 [shape = 's32[1]{0}', space=sflag, size = 0x4, scoped, tag = 'scoped memory for tpu_custom_call.1']
    #allocation5 [shape = 's32[1]{0}', space=sflag, size = 0x4, scoped, tag = 'scoped memory for tpu_custom_call.1']
    #allocation6 [shape = 'u8[8192]{0}', space=vmem, size = 0x2000, scoped, tag = 'output window, operand 0, single buffered']
    %8 = vsyncpa [#allocation4], 0
    %9 = vsyncpa [#allocation5], 0
    // Predicated region
    $region2: #{tpu_custom_call.1} parent=1 // pred_check
      _
    $region3: #{tpu_custom_call.1} parent=1 // pred_check_branch
      %11 = sbr.rel (0) target = $region5
    $region4: #{tpu_custom_call.1} parent=1 // pred_region
      _
    $region5: #{tpu_custom_call.1} parent=1 // pred_fallthru
      _
    // Predicated region
    $region6: #{tpu_custom_call.1} parent=1 // pred_check
      _
    $region7: #{tpu_custom_call.1} parent=1 // pred_check_branch
      %13 = sbr.rel (0) target = $region9
    $region8: #{tpu_custom_call.1} parent=1 // pred_region
      %s15 = ssub.s32 256, 256
      %16 = vsyncadd [#allocation4], %s15
      %s17 = sshll.u32 [#allocation3], 4
      %s18 = int_to_ptr.vmem [resolvable:$true] %s17
      %23 = dma.hbm_to_vmem [thread:$0]  %s1, 256, %s18, [#allocation4], 128, 128, 8
    $region9: #{tpu_custom_call.1} parent=1 // pred_fallthru
      _
    // Predicated region
    $region10: #{tpu_custom_call.1} parent=1 // pred_check
      _
    $region11: #{tpu_custom_call.1} parent=1 // pred_check_branch
      %25 = sbr.rel (0) target = $region13
    $region12: #{tpu_custom_call.1} parent=1 // pred_region
      %26 = dma.done [#allocation4], 256
    $region13: #{tpu_custom_call.1} parent=1 // pred_fallthru
      _
    %s27 = sld [smem:[#allocation2]]
    %v28 = vld [vmem:[#allocation3] sm:$0xff]
    %v29 = vld [vmem:[#allocation3 + $0x8] sm:$0xff]
    %v30 = vstv %s27
    %v31 = vadd.f32 %v28, %v30
    %v32 = vadd.f32 %v29, %v30
    %v33 = vsub.f32 %v31, %v30
    %v34 = vsub.f32 %v32, %v30
    %35 = vst [vmem:[#allocation6] sm:$0xff] %v33
    %36 = vst [vmem:[#allocation6 + $0x8] sm:$0xff] %v34
    // Predicated region
    $region14: #{tpu_custom_call.1} parent=1 // pred_check
      _
    $region15: #{tpu_custom_call.1} parent=1 // pred_check_branch
      %38 = sbr.rel (0) target = $region17
    $region16: #{tpu_custom_call.1} parent=1 // pred_region
      %s40 = ssub.s32 256, 256
      %41 = vsyncadd [#allocation5], %s40
      %s42 = sshll.u32 [#allocation6], 4
      %s43 = int_to_ptr.vmem [resolvable:$true] %s42
      %48 = dma.vmem_to_hbm [thread:$0]  %s43, 256, %s2, [#allocation5], 128, 128, 8
    $region17: #{tpu_custom_call.1} parent=1 // pred_fallthru
      _
    // Predicated region
    $region18: #{tpu_custom_call.1} parent=1 // pred_check
      _
    $region19: #{tpu_custom_call.1} parent=1 // pred_check_branch
      %50 = sbr.rel (0) target = $region21
    $region20: #{tpu_custom_call.1} parent=1 // pred_region
      %51 = dma.done [#allocation5], 256
    $region21: #{tpu_custom_call.1} parent=1 // pred_fallthru
      _
    %52 = vsyncpa [#allocation4], 1
    %53 = vsyncpa [#allocation5], 1

</llo_original>
